<compile_context>
chip_gen: v6e
topology: v6e:2x2x1
jax: 0.10.0
libtpu: 0.0.40
codegen_flags: <defaults>
</compile_context>

<pallas_src>
import jax
import jax.numpy as jnp
from jax.experimental import pallas as pl
from jax.experimental.pallas import tpu as pltpu

LANES = 128
ROW_TILE = 8                       # minimal sublane granularity


def _cdiv(a: int, b: int) -> int:
    return -(-a // b)


_TUNING_CACHE = None


def _chip_tuning():
    """(max_block_rows, ncores) chosen from the local chip generation."""
    global _TUNING_CACHE
    if _TUNING_CACHE is None:
        try:
            kind = jax.devices()[0].device_kind.lower()
        except Exception:  # pragma: no cover - non-TPU fallback
            kind = ""
        if "v7" in kind or "7x" in kind:
            # 64 MiB VMEM / 32 MiB scoped default; 2 TensorCores per chip.
            _TUNING_CACHE = (8192, 2)
        elif "v6" in kind:
            # 128 MiB VMEM / 32 MiB scoped default; single TensorCore.
            _TUNING_CACHE = (8192, 1)
        else:
            # v5e (16 MiB default scoped VMEM) or unknown: stay conservative.
            _TUNING_CACHE = (4096, 1)
    return _TUNING_CACHE


def _confusion_kernel(labels_ref, logits_ref, acc_ref):
    """Accumulate per-lane [tp, sum_pred, sum_lab] int32 counts.

    acc_ref block: (1, 3, 128) per core, resident across the reduction axis.
    The kernel assumes its blocks tile the input exactly (no padding, no mask).
    """
    @pl.when(pl.program_id(1) == 0)
    def _():
        acc_ref[...] = jnp.zeros_like(acc_ref)

    # sigmoid(x) > 0.5  <=>  x > 0  (strict '>' matches torchmetrics); compare in
    # the native dtype (works for f32 / bf16 logits, float / int / bool labels).
    preds = logits_ref[...] > 0
    labs = labels_ref[...]
    if labs.dtype != jnp.bool_:
        labs = labs > 0.5

    acc_ref[0, 0:1, :] += jnp.sum((preds & labs).astype(jnp.int32),
                                  axis=0, keepdims=True)
    acc_ref[0, 1:2, :] += jnp.sum(preds.astype(jnp.int32),
                                  axis=0, keepdims=True)
    acc_ref[0, 2:3, :] += jnp.sum(labs.astype(jnp.int32),
                                  axis=0, keepdims=True)


def _confusion_counts(labels2d, logits2d, block_rows: int, ncores: int):
    """labels2d / logits2d: (M, 128) with M == ncores * nb_per_core * block_rows.
    Returns (3,) int32: [tp, sum_pred, sum_lab]."""
    M, N = labels2d.shape
    assert N == LANES and block_rows % ROW_TILE == 0
    nb = M // block_rows
    assert nb * block_rows == M and nb % ncores == 0
    nb_per_core = nb // ncores

    bytes_accessed = (labels2d.size * labels2d.dtype.itemsize
                      + logits2d.size * logits2d.dtype.itemsize)

    in_spec = pl.BlockSpec((block_rows, LANES),
                           lambda c, i: (c * nb_per_core + i, 0))

    acc = pl.pallas_call(
        _confusion_kernel,
        out_shape=jax.ShapeDtypeStruct((ncores, 3, LANES), jnp.int32),
        grid=(ncores, nb_per_core),
        in_specs=[in_spec, in_spec],
        out_specs=pl.BlockSpec((1, 3, LANES), lambda c, i: (c, 0, 0)),
        compiler_params=pltpu.CompilerParams(
            dimension_semantics=("parallel", "arbitrary")),
        cost_estimate=pl.CostEstimate(
            flops=6 * M * LANES, transcendentals=0,
            bytes_accessed=bytes_accessed),
    )(labels2d, logits2d)

    return jnp.sum(acc, axis=(0, 2))  # (3,) [tp, sum_pred, sum_lab]


@jax.jit
def _update_counts(counts, labels, logits):
    """counts: (4,) int32 running [tp, fp, fn, tn]; labels/logits: equal shapes."""
    lab = labels.reshape(-1)
    log = logits.reshape(-1)
    n = lab.shape[0]

    max_rows, ncores = _chip_tuning()

    # ---- kernel part: largest prefix tiling exactly into (block_rows, 128) blocks.
    rows_aligned = ((n // LANES) // ROW_TILE) * ROW_TILE
    kernel_rows = 0
    if rows_aligned > 0:
        nb = ncores * _cdiv(rows_aligned, ncores * max_rows)
        block_rows = ((rows_aligned // nb) // ROW_TILE) * ROW_TILE
        if block_rows == 0:           # too little work to split across cores
            ncores = 1
            nb = _cdiv(rows_aligned, max_rows)
            block_rows = ((rows_aligned // nb) // ROW_TILE) * ROW_TILE
        kernel_rows = nb * block_rows

    n_kernel = kernel_rows * LANES
    if kernel_rows > 0:
        k3 = _confusion_counts(
            lab[:n_kernel].reshape(kernel_rows, LANES),
            log[:n_kernel].reshape(kernel_rows, LANES),
            block_rows, ncores)
    else:
        k3 = jnp.zeros((3,), jnp.int32)

    # ---- tail part (everything the kernel did not cover): tiny jnp reduce.
    if n_kernel < n:
        t_log = log[n_kernel:]
        t_lab = lab[n_kernel:]
        t_preds = t_log > 0
        t_labs = t_lab if t_lab.dtype == jnp.bool_ else (t_lab > 0.5)
        t3 = jnp.stack([
            jnp.sum((t_preds & t_labs).astype(jnp.int32)),
            jnp.sum(t_preds.astype(jnp.int32)),
            jnp.sum(t_labs.astype(jnp.int32)),
        ])
    else:
        t3 = jnp.zeros((3,), jnp.int32)

    total3 = k3 + t3
    tp = total3[0]
    fp = total3[1] - tp
    fn = total3[2] - tp
    tn = n - tp - fp - fn
    return counts + jnp.stack([tp, fp, fn, tn]).astype(jnp.int32)


class OccupancyMetrics:
    """Stateful re-implementation of the torch module: __call__ accumulates exact
    confusion counts on device (sigmoid folded into a sign threshold inside the
    Pallas kernel); get_metrics() returns accuracy / F1."""

    def __init__(self) -> None:
        self.reset()

    def reset(self):
        # [tp, fp, fn, tn], exact int32, stays on device.
        self._counts = jnp.zeros((4,), jnp.int32)

    def __call__(self, occupancy_labels: jax.Array, icg_net: jax.Array):
        if icg_net.shape[0] == 0:
            return
        assert occupancy_labels.shape == icg_net.shape, "label / logit shape mismatch"
        self._counts = _update_counts(self._counts, occupancy_labels, icg_net)

    # torch-like alias
    forward = __call__

    def get_metrics(self, prefix: str = ""):
        tp, fp, fn, tn = (self._counts[i].astype(jnp.float32) for i in range(4))
        total = tp + fp + fn + tn
        acc = (tp + tn) / jnp.maximum(total, 1.0)
        denom = 2.0 * tp + fp + fn
        f1 = jnp.where(denom > 0, (2.0 * tp) / jnp.maximum(denom, 1.0), 0.0)
        return {f"{prefix}/acc": acc, f"{prefix}/f1": f1}


if __name__ == "__main__":
    key = jax.random.PRNGKey(0)
    k1, k2 = jax.random.split(key)
    shape = (2, 4, 16, 16)  # batch=2, channels=4, spatial=16x16
    icg_net_logits = jax.random.normal(k1, shape, dtype=jnp.float32)
    occupancy_labels = (jax.random.uniform(k2, shape) > 0.5).astype(jnp.float32)

    m = OccupancyMetrics()
    m(occupancy_labels, icg_net_logits)
    metrics = m.get_metrics(prefix="eval")
    for v in metrics.values():
        jax.block_until_ready(v)

    # Reference check in plain JAX (torchmetrics semantics: sigmoid, then > 0.5).
    probs = jax.nn.sigmoid(icg_net_logits)
    preds = (probs > 0.5).astype(jnp.float32)
    lab = (occupancy_labels > 0.5).astype(jnp.float32)
    tp = float(jnp.sum(preds * lab)); fp = float(jnp.sum(preds * (1 - lab)))
    fn = float(jnp.sum((1 - preds) * lab)); tn = float(jnp.sum((1 - preds) * (1 - lab)))
    ref_acc = (tp + tn) / (tp + fp + fn + tn)
    ref_f1 = 2 * tp / (2 * tp + fp + fn)
    assert abs(float(metrics["eval/acc"]) - ref_acc) < 1e-5, (float(metrics["eval/acc"]), ref_acc)
    assert abs(float(metrics["eval/f1"]) - ref_f1) < 1e-5, (float(metrics["eval/f1"]), ref_f1)

    # Second call with a ragged size to exercise the kernel-prefix + jnp-tail path.
    k3, k4 = jax.random.split(k2)
    ragged = (1, 3, 17, 23)  # 1173 elements -> 1024 via kernel, 149 via tail
    m2 = OccupancyMetrics()
    logits_r = jax.random.normal(k3, ragged, dtype=jnp.float32)
    labels_r = (jax.random.uniform(k4, ragged) > 0.5).astype(jnp.float32)
    m2(labels_r, logits_r)
    mr = m2.get_metrics(prefix="r")
    preds_r = (jax.nn.sigmoid(logits_r) > 0.5).astype(jnp.float32)
    lab_r = (labels_r > 0.5).astype(jnp.float32)
    tp_r = float(jnp.sum(preds_r * lab_r)); fp_r = float(jnp.sum(preds_r * (1 - lab_r)))
    fn_r = float(jnp.sum((1 - preds_r) * lab_r)); tn_r = float(jnp.sum((1 - preds_r) * (1 - lab_r)))
    ref_acc_r = (tp_r + tn_r) / (tp_r + fp_r + fn_r + tn_r)
    ref_f1_r = 2 * tp_r / (2 * tp_r + fp_r + fn_r)
    assert abs(float(mr["r/acc"]) - ref_acc_r) < 1e-5, (float(mr["r/acc"]), ref_acc_r)
    assert abs(float(mr["r/f1"]) - ref_f1_r) < 1e-5, (float(mr["r/f1"]), ref_f1_r)

    print("KERNEL_OK")
</pallas_src>

<mosaic_0001>
module attributes {stable_mosaic.version = 11 : i64} {
  func.func @_confusion_kernel(%arg0: i32, %arg1: i32, %arg2: memref<16x128xf32, #tpu.memory_space<vmem>>, %arg3: memref<16x128xf32, #tpu.memory_space<vmem>>, %arg4: memref<1x3x128xi32, #tpu.memory_space<vmem>>) attributes {dimension_semantics = [#tpu.dimension_semantics<parallel>, #tpu.dimension_semantics<arbitrary>], iteration_bounds = array<i64: 1, 1>, scalar_prefetch = 0 : i64, scratch_operands = 0 : i64, tpu.core_type = #tpu.core_type<tc>, window_params = [{transform_indices = @transform_0, window_bounds = array<i64: 16, 128>}, {transform_indices = @transform_1, window_bounds = array<i64: 16, 128>}, {transform_indices = @transform_2, window_bounds = array<i64: 1, 3, 128>}]} {
    %c0_i32 = arith.constant 0 : i32
    %0 = arith.cmpi eq, %arg1, %c0_i32 : i32
    %1 = arith.extui %0 : i1 to i32
    %c0_i32_0 = arith.constant 0 : i32
    %2 = arith.cmpi ne, %1, %c0_i32_0 : i32
    scf.if %2 {
      %c0_i32_24 = arith.constant 0 : i32
      %37 = vector.broadcast %c0_i32_24 : i32 to vector<1x3x128xi32>
      %c0_25 = arith.constant 0 : index
      %c0_26 = arith.constant 0 : index
      %c0_27 = arith.constant 0 : index
      %38 = vector.load %arg4[%c0_25, %c0_26, %c0_27] : memref<1x3x128xi32, #tpu.memory_space<vmem>>, vector<1x3x128xi32>
      tpu.vector_store %arg4[%c0_25, %c0_26, %c0_27], %37 {strides = array<i32>} : memref<1x3x128xi32, #tpu.memory_space<vmem>>, vector<1x3x128xi32>,
    } else {
    }
    %c0 = arith.constant 0 : index
    %c0_1 = arith.constant 0 : index
    %3 = vector.load %arg3[%c0, %c0_1] : memref<16x128xf32, #tpu.memory_space<vmem>>, vector<16x128xf32>
    %cst = arith.constant 0.000000e+00 : f32
    %4 = vector.broadcast %cst : f32 to vector<16x128xf32>
    %5 = arith.cmpf ogt, %3, %4 : vector<16x128xf32>
    %c0_2 = arith.constant 0 : index
    %c0_3 = arith.constant 0 : index
    %6 = vector.load %arg2[%c0_2, %c0_3] : memref<16x128xf32, #tpu.memory_space<vmem>>, vector<16x128xf32>
    %cst_4 = arith.constant 5.000000e-01 : f32
    %7 = vector.broadcast %cst_4 : f32 to vector<16x128xf32>
    %8 = arith.cmpf ogt, %6, %7 : vector<16x128xf32>
    %c0_5 = arith.constant 0 : index
    %c0_6 = arith.constant 0 : index
    %c0_7 = arith.constant 0 : index
    %9 = vector.load %arg4[%c0_5, %c0_6, %c0_7] : memref<1x3x128xi32, #tpu.memory_space<vmem>>, vector<1x1x128xi32>
    %10 = vector.shape_cast %9 : vector<1x1x128xi32> to vector<1x128xi32>
    %11 = arith.andi %5, %8 : vector<16x128xi1>
    %12 = arith.extui %11 : vector<16x128xi1> to vector<16x128xi32>
    %cst_8 = arith.constant dense<0> : vector<128xi32>
    %13 = vector.multi_reduction <add>, %12, %cst_8 [0] : vector<16x128xi32> to vector<128xi32>
    %14 = vector.shape_cast %13 : vector<128xi32> to vector<1x128xi32>
    %15 = arith.addi %10, %14 : vector<1x128xi32>
    %c0_9 = arith.constant 0 : index
    %c0_10 = arith.constant 0 : index
    %c0_11 = arith.constant 0 : index
    %16 = vector.load %arg4[%c0_9, %c0_10, %c0_11] : memref<1x3x128xi32, #tpu.memory_space<vmem>>, vector<1x1x128xi32>
    %17 = vector.shape_cast %16 : vector<1x1x128xi32> to vector<1x128xi32>
    %18 = vector.shape_cast %15 : vector<1x128xi32> to vector<1x1x128xi32>
    tpu.vector_store %arg4[%c0_9, %c0_10, %c0_11], %18 {strides = array<i32>} : memref<1x3x128xi32, #tpu.memory_space<vmem>>, vector<1x1x128xi32>,
    %c0_12 = arith.constant 0 : index
    %c1 = arith.constant 1 : index
    %c0_13 = arith.constant 0 : index
    %19 = vector.load %arg4[%c0_12, %c1, %c0_13] : memref<1x3x128xi32, #tpu.memory_space<vmem>>, vector<1x1x128xi32>
    %20 = vector.shape_cast %19 : vector<1x1x128xi32> to vector<1x128xi32>
    %21 = arith.extui %5 : vector<16x128xi1> to vector<16x128xi32>
    %cst_14 = arith.constant dense<0> : vector<128xi32>
    %22 = vector.multi_reduction <add>, %21, %cst_14 [0] : vector<16x128xi32> to vector<128xi32>
    %23 = vector.shape_cast %22 : vector<128xi32> to vector<1x128xi32>
    %24 = arith.addi %20, %23 : vector<1x128xi32>
    %c0_15 = arith.constant 0 : index
    %c1_16 = arith.constant 1 : index
    %c0_17 = arith.constant 0 : index
    %25 = vector.load %arg4[%c0_15, %c1_16, %c0_17] : memref<1x3x128xi32, #tpu.memory_space<vmem>>, vector<1x1x128xi32>
    %26 = vector.shape_cast %25 : vector<1x1x128xi32> to vector<1x128xi32>
    %27 = vector.shape_cast %24 : vector<1x128xi32> to vector<1x1x128xi32>
    tpu.vector_store %arg4[%c0_15, %c1_16, %c0_17], %27 {strides = array<i32>} : memref<1x3x128xi32, #tpu.memory_space<vmem>>, vector<1x1x128xi32>,
    %c0_18 = arith.constant 0 : index
    %c2 = arith.constant 2 : index
    %c0_19 = arith.constant 0 : index
    %28 = vector.load %arg4[%c0_18, %c2, %c0_19] : memref<1x3x128xi32, #tpu.memory_space<vmem>>, vector<1x1x128xi32>
    %29 = vector.shape_cast %28 : vector<1x1x128xi32> to vector<1x128xi32>
    %30 = arith.extui %8 : vector<16x128xi1> to vector<16x128xi32>
    %cst_20 = arith.constant dense<0> : vector<128xi32>
    %31 = vector.multi_reduction <add>, %30, %cst_20 [0] : vector<16x128xi32> to vector<128xi32>
    %32 = vector.shape_cast %31 : vector<128xi32> to vector<1x128xi32>
    %33 = arith.addi %29, %32 : vector<1x128xi32>
    %c0_21 = arith.constant 0 : index
    %c2_22 = arith.constant 2 : index
    %c0_23 = arith.constant 0 : index
    %34 = vector.load %arg4[%c0_21, %c2_22, %c0_23] : memref<1x3x128xi32, #tpu.memory_space<vmem>>, vector<1x1x128xi32>
    %35 = vector.shape_cast %34 : vector<1x1x128xi32> to vector<1x128xi32>
    %36 = vector.shape_cast %33 : vector<1x128xi32> to vector<1x1x128xi32>
    tpu.vector_store %arg4[%c0_21, %c2_22, %c0_23], %36 {strides = array<i32>} : memref<1x3x128xi32, #tpu.memory_space<vmem>>, vector<1x1x128xi32>,
    return
  }
  func.func @transform_0(%arg0: i32, %arg1: i32) -> (i32, i32) {
    %c1_i32 = arith.constant 1 : i32
    %0 = arith.muli %arg0, %c1_i32 : i32
    %1 = arith.addi %0, %arg1 : i32
    %c0_i32 = arith.constant 0 : i32
    %c0_i32_0 = arith.constant 0 : i32
    return %1, %c0_i32 : i32, i32
  }
  func.func @transform_1(%arg0: i32, %arg1: i32) -> (i32, i32) {
    %c1_i32 = arith.constant 1 : i32
    %0 = arith.muli %arg0, %c1_i32 : i32
    %1 = arith.addi %0, %arg1 : i32
    %c0_i32 = arith.constant 0 : i32
    %c0_i32_0 = arith.constant 0 : i32
    return %1, %c0_i32 : i32, i32
  }
  func.func @transform_2(%arg0: i32, %arg1: i32) -> (i32, i32, i32) {
    %c0_i32 = arith.constant 0 : i32
    %c0_i32_0 = arith.constant 0 : i32
    %c0_i32_1 = arith.constant 0 : i32
    return %arg0, %c0_i32, %c0_i32_0 : i32, i32, i32
  }
}

</mosaic_0001>

<llo_original>
// kernel: _update_counts.1
$region0: #{_update_counts.1}
  #allocation0 [shape = 'u32[]', space=smem, size = 0x4, offset = 0x4, fixed_abs, tag = 'smem constant byte address 0x4 - core index']
  #allocation1 [shape = 'u32[144,128]{1,0:T(1,128)}', space=vmem, size = 0x12000, scoped, tag = 'internal scratch']
  %s0 = inlined_call_operand.vmem [shape: f32[16,128], index: 0, kind: input, shape index: {}]
  %s1 = inlined_call_operand.vmem [shape: f32[16,128], index: 1, kind: input, shape index: {}]
  %s2 = inlined_call_operand.vmem [shape: s32[1,3,128], index: 2, kind: output, shape index: {}]
  %s3 = sld [smem:[#allocation0]]
  $region22: #{_update_counts.1} parent=0
    _
  %s5 = ssub.s32 1, %s3
  %s6 = scalar_select 0, %s5, %s3
  // Predicated region
  $region2: #{_update_counts.1} parent=0 // pred_check
    _
  $region3: #{_update_counts.1} parent=0 // pred_check_branch
    %8 = sbr.rel (0) target = $region5
  $region4: #{_update_counts.1} parent=0 // pred_region
    %s9 = sadd.s32 0, 0
    %s10 = smul.u32 2, %s9
    %p11 = scmp.lt.s32.totalorder %s10, 1
    %s12 = scalar_select %p11, %s10, 1
    %s13 = smul.addr %s12, 8
    %s14 = scalar_lea.vmem %s0, %s13
    %s15 = sadd.s32 0, 0
    %s16 = smul.u32 2, %s15
  $region5: #{_update_counts.1} parent=0 // pred_fallthru
    _
  // Predicated region
  $region6: #{_update_counts.1} parent=0 // pred_check
    _
  $region7: #{_update_counts.1} parent=0 // pred_check_branch
    %18 = sbr.rel (0) target = $region9
  $region8: #{_update_counts.1} parent=0 // pred_region
    %s19 = sadd.s32 0, 0
    %s20 = smul.u32 2, %s19
    %p21 = scmp.lt.s32.totalorder %s20, 1
    %s22 = scalar_select %p21, %s20, 1
    %s23 = smul.addr %s22, 8
    %s24 = scalar_lea.vmem %s1, %s23
    %s25 = sadd.s32 0, 0
    %s26 = smul.u32 2, %s25
  $region9: #{_update_counts.1} parent=0 // pred_fallthru
    _
  %s27 = sadd.s32 0, 0
  %s28 = smul.u32 2, %s27
  %p29 = scmp.lt.s32.totalorder %s28, 1
  %s30 = scalar_select %p29, %s28, 1
  %s31 = smul.addr %s30, 8
  %s32 = scalar_lea.vmem %s0, %s31
  %s33 = sadd.s32 0, 0
  %s34 = smul.u32 2, %s33
  %p35 = scmp.lt.s32.totalorder %s34, 1
  %s36 = scalar_select %p35, %s34, 1
  %s37 = smul.addr %s36, 8
  %s38 = scalar_lea.vmem %s1, %s37
  %s39 = sadd.s32 0, 0
  %s40 = smul.u32 2, %s39
  %p41 = scmp.lt.s32.totalorder %s40, 1
  %s42 = scalar_select %p41, %s40, 1
  %s43 = smul.addr %s42, 8
  %s44 = scalar_lea.vmem %s0, %s43
  %s45 = sadd.s32 0, 0
  %s46 = smul.u32 2, %s45
  %s47 = sadd.s32 0, 0
  %s48 = smul.u32 2, %s47
  %p49 = scmp.lt.s32.totalorder %s48, 1
  %s50 = scalar_select %p49, %s48, 1
  %s51 = smul.addr %s50, 8
  %s52 = scalar_lea.vmem %s1, %s51
  %s53 = sadd.s32 0, 0
  %s54 = smul.u32 2, %s53
  %p55 = scmp.eq.s32.totalorder 0, 0
  // Predicated region
  $region10: #{_update_counts.1} parent=0 // pred_check
    %p56 = pneg %p55
  $region11: #{_update_counts.1} parent=0 // pred_check_branch
    %58 = sbr.rel (%p56) target = $region13
  $region12: #{_update_counts.1} parent=0 // pred_region
    %59 = vst [vmem:[%s2] sm:$0x7] 0
  $region13: #{_update_counts.1} parent=0 // pred_fallthru
    _
  %v60 = vld [vmem:[%s52] sm:$0xff]
  %v61 = vld [vmem:[%s52 + $0x8] sm:$0xff]
  %vm62 = vcmp.gt.f32.partialorder %v60, 0.0
  %vm63 = vcmp.gt.f32.partialorder %v61, 0.0
  %v64 = vld [vmem:[%s44] sm:$0xff]
  %v65 = vld [vmem:[%s44 + $0x8] sm:$0xff]
  %vm66 = vcmp.gt.f32.partialorder %v64, 0.5
  %vm67 = vcmp.gt.f32.partialorder %v65, 0.5
  %v68 = vld [vmem:[%s2] sm:$0x1]
  %vm69 = vmand %vm62, %vm66
  %vm70 = vmand %vm63, %vm67
  %v71 = vsel %vm69, 1, 0
  %v72 = vsel %vm70, 1, 0
  %v73 = vadd.s32 %v71, %v72
  %v74 = vrot.slane %v73, 4
  %v75 = vadd.s32 %v73, %v74
  %v76 = vrot.slane %v75, 2
  %v77 = vadd.s32 %v75, %v76
  %v78 = vrot.slane %v77, 1
  %v79 = vadd.s32 %v77, %v78
  %v80 = vadd.s32 %v68, %v79
  %81 = vst [vmem:[%s2] sm:$0x1] %v80
  %v82 = vld [vmem:[%s2 + $0x1] sm:$0x1]
  %v83 = vsel %vm62, 1, 0
  %v84 = vsel %vm63, 1, 0
  %v85 = vadd.s32 %v83, %v84
  %v86 = vrot.slane %v85, 4
  %v87 = vadd.s32 %v85, %v86
  %v88 = vrot.slane %v87, 2
  %v89 = vadd.s32 %v87, %v88
  %v90 = vrot.slane %v89, 1
  %v91 = vadd.s32 %v89, %v90
  %v92 = vadd.s32 %v82, %v91
  %93 = vst [vmem:[%s2 + $0x1] sm:$0x1] %v92
  %v94 = vld [vmem:[%s2 + $0x2] sm:$0x1]
  %v95 = vsel %vm66, 1, 0
  %v96 = vsel %vm67, 1, 0
  %v97 = vadd.s32 %v95, %v96
  %v98 = vrot.slane %v97, 4
  %v99 = vadd.s32 %v97, %v98
  %v100 = vrot.slane %v99, 2
  %v101 = vadd.s32 %v99, %v100
  %v102 = vrot.slane %v101, 1
  %v103 = vadd.s32 %v101, %v102
  %v104 = vadd.s32 %v94, %v103
  %105 = vst [vmem:[%s2 + $0x2] sm:$0x1] %v104
  // Predicated region
  $region14: #{_update_counts.1} parent=0 // pred_check
    _
  $region15: #{_update_counts.1} parent=0 // pred_check_branch
    %107 = sbr.rel (0) target = $region17
  $region16: #{_update_counts.1} parent=0 // pred_region
    _
  $region17: #{_update_counts.1} parent=0 // pred_fallthru
    _
  // Predicated region
  $region18: #{_update_counts.1} parent=0 // pred_check
    _
  $region19: #{_update_counts.1} parent=0 // pred_check_branch
    %109 = sbr.rel (0) target = $region21
  $region20: #{_update_counts.1} parent=0 // pred_region
    _
  $region21: #{_update_counts.1} parent=0 // pred_fallthru
    _

</llo_original>
